<compile_context>
chip_gen: v7x
topology: tpu7x:2x2x1
jax: 0.10.0
libtpu: 0.0.40
codegen_flags: <defaults>
</compile_context>

<pallas_src>
import functools

import jax
import jax.numpy as jnp
from jax.experimental import pallas as pl
from jax.experimental.pallas import tpu as pltpu

LANE = 128      # vreg lane width (last dim)
SUBLANE = 8     # vreg sublane count (second-to-last dim, f32)


def _round_up(x, m):
    return (x + m - 1) // m * m


def _mlp_kernel(x_ref, w1_ref, b1_ref, w2_ref, b2_ref, out_ref):
    # x: (TB, Ip)  w1: (Ip, Hp)  b1: (1, Hp)  w2: (Hp, Op)  b2: (1, Op)
    x = x_ref[...]
    # hidden = relu(x @ W1 + b1)  -- MXU matmul with f32 accumulation
    h = jnp.dot(x, w1_ref[...], preferred_element_type=jnp.float32)
    h = jnp.maximum(h + b1_ref[...], 0.0)          # bias bcast + ReLU on VPU
    # out = hidden @ W2 + b2
    o = jnp.dot(h, w2_ref[...], preferred_element_type=jnp.float32)
    out_ref[...] = (o + b2_ref[...]).astype(out_ref.dtype)


def prepare_params(w1, b1, w2, b2):
    """One-time parameter prep (do NOT call per forward).

    w1: (H, I), b1: (H,), w2: (O, H), b2: (O,)  -- PyTorch nn.Linear layout.
    Returns pre-transposed, lane-padded (to 128) f32 parameters plus the true
    output size.  Zero padding is exact: padded input columns see zero
    activations, padded hidden units get bias 0 -> relu(0)=0 -> multiplied by
    zero rows of W2, and padded output columns are sliced away.
    """
    H, I = w1.shape
    O = w2.shape[0]
    Ip, Hp, Op = _round_up(I, LANE), _round_up(H, LANE), _round_up(O, LANE)
    w1_t = jnp.zeros((Ip, Hp), jnp.float32).at[:I, :H].set(jnp.asarray(w1, jnp.float32).T)
    b1_p = jnp.zeros((1, Hp), jnp.float32).at[0, :H].set(jnp.asarray(b1, jnp.float32))
    w2_t = jnp.zeros((Hp, Op), jnp.float32).at[:H, :O].set(jnp.asarray(w2, jnp.float32).T)
    b2_p = jnp.zeros((1, Op), jnp.float32).at[0, :O].set(jnp.asarray(b2, jnp.float32))
    return w1_t, b1_p, w2_t, b2_p, O


@functools.partial(jax.jit, static_argnames=("out_size", "block_batch"))
def fizzbuzz_forward(x, w1_t, b1_p, w2_t, b2_p, *, out_size, block_batch=512):
    """Forward pass.  x: (B, I) f32; params from prepare_params()."""
    B, I = x.shape
    Ip, Hp = w1_t.shape
    Op = w2_t.shape[1]

    if B <= block_batch:
        # ---- single-tile path: no grid, no pipelining overhead ------------
        Bp = _round_up(max(B, 1), SUBLANE)
        x_p = jnp.zeros((Bp, Ip), jnp.float32).at[:B, :I].set(x)
        out_p = pl.pallas_call(
            _mlp_kernel,
            out_shape=jax.ShapeDtypeStruct((Bp, Op), jnp.float32),
            in_specs=[pl.BlockSpec(memory_space=pltpu.MemorySpace.VMEM)] * 5,
            out_specs=pl.BlockSpec(memory_space=pltpu.MemorySpace.VMEM),
        )(x_p, w1_t, b1_p, w2_t, b2_p)
    else:
        # ---- batched path: tile the batch axis, weights stay VMEM-resident
        Bp = _round_up(B, block_batch)
        x_p = jnp.zeros((Bp, Ip), jnp.float32).at[:B, :I].set(x)
        out_p = pl.pallas_call(
            _mlp_kernel,
            out_shape=jax.ShapeDtypeStruct((Bp, Op), jnp.float32),
            grid_spec=pltpu.PrefetchScalarGridSpec(
                num_scalar_prefetch=0,
                grid=(Bp // block_batch,),
                in_specs=[
                    pl.BlockSpec((block_batch, Ip), lambda i: (i, 0)),
                    pl.BlockSpec((Ip, Hp), lambda i: (0, 0)),   # resident
                    pl.BlockSpec((1, Hp), lambda i: (0, 0)),    # resident
                    pl.BlockSpec((Hp, Op), lambda i: (0, 0)),   # resident
                    pl.BlockSpec((1, Op), lambda i: (0, 0)),    # resident
                ],
                out_specs=pl.BlockSpec((block_batch, Op), lambda i: (i, 0)),
            ),
            compiler_params=pltpu.CompilerParams(
                # independent batch tiles -> shard across TCs (v7x megacore)
                dimension_semantics=("parallel",),
            ),
        )(x_p, w1_t, b1_p, w2_t, b2_p)

    return out_p[:B, :out_size]


def _reference(x, w1, b1, w2, b2):
    # Exactly what the PyTorch module computes: relu(x @ W1.T + b1) @ W2.T + b2
    h = jnp.maximum(x @ w1.T + b1, 0.0)
    return h @ w2.T + b2


if __name__ == "__main__":
    # FizzBuzz-style sizes: binary-encoded input, hidden layer, 4 output classes.
    input_size, hidden_size, output_size = 16, 32, 4

    key = jax.random.PRNGKey(0)
    kx, kw1, kb1, kw2, kb2, kx2 = jax.random.split(key, 6)

    # Deterministic parameter init (Kaiming-uniform-ish bounds like nn.Linear),
    # in PyTorch layout: weight (out_features, in_features).
    bound1 = 1.0 / jnp.sqrt(input_size)
    bound2 = 1.0 / jnp.sqrt(hidden_size)
    w1 = jax.random.uniform(kw1, (hidden_size, input_size), jnp.float32, -bound1, bound1)
    b1 = jax.random.uniform(kb1, (hidden_size,), jnp.float32, -bound1, bound1)
    w2 = jax.random.uniform(kw2, (output_size, hidden_size), jnp.float32, -bound2, bound2)
    b2 = jax.random.uniform(kb2, (output_size,), jnp.float32, -bound2, bound2)

    # One-time parameter prep (transpose + lane padding).
    w1_t, b1_p, w2_t, b2_p, out_sz = prepare_params(w1, b1, w2, b2)

    # --- small batch: exercises the grid-free single-tile path ---------------
    batch = 8
    x = jax.random.normal(kx, (batch, input_size), dtype=jnp.float32)
    out = jax.block_until_ready(fizzbuzz_forward(x, w1_t, b1_p, w2_t, b2_p, out_size=out_sz))
    ref = _reference(x, w1, b1, w2, b2)
    assert out.shape == (batch, output_size)
    assert jnp.allclose(out, ref, atol=1e-5, rtol=1e-5), "small-batch mismatch vs reference"

    # --- larger, non-aligned batch: exercises the tiled/parallel grid path ---
    batch2 = 600
    x2 = jax.random.normal(kx2, (batch2, input_size), dtype=jnp.float32)
    out2 = jax.block_until_ready(
        fizzbuzz_forward(x2, w1_t, b1_p, w2_t, b2_p, out_size=out_sz, block_batch=256)
    )
    ref2 = _reference(x2, w1, b1, w2, b2)
    assert out2.shape == (batch2, output_size)
    assert jnp.allclose(out2, ref2, atol=1e-5, rtol=1e-5), "tiled-batch mismatch vs reference"

    print("KERNEL_OK")
</pallas_src>

<mosaic_0001>
module attributes {stable_mosaic.version = 11 : i64} {
  func.func @_mlp_kernel(%arg0: memref<8x128xf32, #tpu.memory_space<vmem>>, %arg1: memref<128x128xf32, #tpu.memory_space<vmem>>, %arg2: memref<1x128xf32, #tpu.memory_space<vmem>>, %arg3: memref<128x128xf32, #tpu.memory_space<vmem>>, %arg4: memref<1x128xf32, #tpu.memory_space<vmem>>, %arg5: memref<8x128xf32, #tpu.memory_space<vmem>>) attributes {dimension_semantics = [], scalar_prefetch = 0 : i64, scratch_operands = 0 : i64, tpu.core_type = #tpu.core_type<tc>} {
    %c0 = arith.constant 0 : index
    %c0_0 = arith.constant 0 : index
    %0 = vector.load %arg0[%c0, %c0_0] : memref<8x128xf32, #tpu.memory_space<vmem>>, vector<8x128xf32>
    %c0_1 = arith.constant 0 : index
    %c0_2 = arith.constant 0 : index
    %1 = vector.load %arg1[%c0_1, %c0_2] : memref<128x128xf32, #tpu.memory_space<vmem>>, vector<128x128xf32>
    %cst = arith.constant dense<0.000000e+00> : vector<8x128xf32>
    %2 = tpu.matmul %0, %1, %cst {dimension_numbers = #tpu.dot_dimension_numbers<[1], [0], [0], [1], [0, 0, 1, 1], [], []>} : vector<8x128xf32>, vector<128x128xf32>, vector<8x128xf32> -> vector<8x128xf32>
    %c0_3 = arith.constant 0 : index
    %c0_4 = arith.constant 0 : index
    %3 = vector.load %arg2[%c0_3, %c0_4] : memref<1x128xf32, #tpu.memory_space<vmem>>, vector<1x128xf32>
    %4 = vector.broadcast %3 : vector<1x128xf32> to vector<8x128xf32>
    %5 = arith.addf %2, %4 : vector<8x128xf32>
    %cst_5 = arith.constant 0.000000e+00 : f32
    %6 = vector.broadcast %cst_5 : f32 to vector<8x128xf32>
    %7 = arith.maximumf %5, %6 : vector<8x128xf32>
    %c0_6 = arith.constant 0 : index
    %c0_7 = arith.constant 0 : index
    %8 = vector.load %arg3[%c0_6, %c0_7] : memref<128x128xf32, #tpu.memory_space<vmem>>, vector<128x128xf32>
    %cst_8 = arith.constant dense<0.000000e+00> : vector<8x128xf32>
    %9 = tpu.matmul %7, %8, %cst_8 {dimension_numbers = #tpu.dot_dimension_numbers<[1], [0], [0], [1], [0, 0, 1, 1], [], []>} : vector<8x128xf32>, vector<128x128xf32>, vector<8x128xf32> -> vector<8x128xf32>
    %c0_9 = arith.constant 0 : index
    %c0_10 = arith.constant 0 : index
    %10 = vector.load %arg4[%c0_9, %c0_10] : memref<1x128xf32, #tpu.memory_space<vmem>>, vector<1x128xf32>
    %11 = vector.broadcast %10 : vector<1x128xf32> to vector<8x128xf32>
    %12 = arith.addf %9, %11 : vector<8x128xf32>
    %c0_11 = arith.constant 0 : index
    %c0_12 = arith.constant 0 : index
    %13 = vector.load %arg5[%c0_11, %c0_12] : memref<8x128xf32, #tpu.memory_space<vmem>>, vector<8x128xf32>
    tpu.vector_store %arg5[%c0_11, %c0_12], %12 {strides = array<i32>} : memref<8x128xf32, #tpu.memory_space<vmem>>, vector<8x128xf32>,
    return
  }
}

</mosaic_0001>

<llo_original>
// kernel: fizzbuzz_forward.1
$region0: #{fizzbuzz_forward.1}
  #allocation0 [shape = 'u32[]', space=smem, size = 0x4, offset = 0x4, fixed_abs, tag = 'smem constant byte address 0x4 - core index']
  #allocation1 [shape = 'u32[144,128]{1,0:T(1,128)}', space=vmem, size = 0x12000, scoped, tag = 'internal scratch']
  %s0 = inlined_call_operand.vmem [shape: f32[8,128], index: 0, kind: input, shape index: {}]
  %s1 = inlined_call_operand.hbm [shape: f32[128,128], index: 1, kind: input, shape index: {}]
  %s2 = inlined_call_operand.vmem [shape: f32[1,128], index: 2, kind: input, shape index: {}]
  %s3 = inlined_call_operand.hbm [shape: f32[128,128], index: 3, kind: input, shape index: {}]
  %s4 = inlined_call_operand.vmem [shape: f32[1,128], index: 4, kind: input, shape index: {}]
  %s5 = inlined_call_operand.vmem [shape: f32[8,128], index: 5, kind: output, shape index: {}]
  %s6 = sld [smem:[#allocation0]]
  $region38: #{fizzbuzz_forward.1} parent=0
    _
  %s8 = ssub.s32 1, %s6
  %s9 = scalar_select 0, %s8, %s6
  $region1: #{fizzbuzz_forward.1} parent=0
    #allocation2 [shape = 'u8[65536]{0}', space=vmem, size = 0x10000, scoped, tag = 'input window, operand 1, single buffered']
    #allocation3 [shape = 's32[1]{0}', space=sflag, size = 0x4, scoped, tag = 'scoped memory for fizzbuzz_forward.1']
    #allocation4 [shape = 'u8[65536]{0}', space=vmem, size = 0x10000, scoped, tag = 'input window, operand 3, single buffered']
    #allocation5 [shape = 's32[1]{0}', space=sflag, size = 0x4, scoped, tag = 'scoped memory for fizzbuzz_forward.1']
    %10 = vsyncpa [#allocation3], 0
    %11 = vsyncpa [#allocation5], 0
    // Predicated region
    $region2: #{fizzbuzz_forward.1} parent=1 // pred_check
      _
    $region3: #{fizzbuzz_forward.1} parent=1 // pred_check_branch
      %13 = sbr.rel (0) target = $region5
    $region4: #{fizzbuzz_forward.1} parent=1 // pred_region
      _
    $region5: #{fizzbuzz_forward.1} parent=1 // pred_fallthru
      _
    // Predicated region
    $region6: #{fizzbuzz_forward.1} parent=1 // pred_check
      _
    $region7: #{fizzbuzz_forward.1} parent=1 // pred_check_branch
      %15 = sbr.rel (0) target = $region9
    $region8: #{fizzbuzz_forward.1} parent=1 // pred_region
      %s17 = ssub.s32 2048, 2048
      %18 = vsyncadd [#allocation3], %s17
      %s19 = sshll.u32 [#allocation2], 4
      %s20 = int_to_ptr.vmem [resolvable:$true] %s19
      %25 = dma.hbm_to_vmem [thread:$0]  %s1, 2048, %s20, [#allocation3], 128, 128, 8
    $region9: #{fizzbuzz_forward.1} parent=1 // pred_fallthru
      _
    // Predicated region
    $region10: #{fizzbuzz_forward.1} parent=1 // pred_check
      _
    $region11: #{fizzbuzz_forward.1} parent=1 // pred_check_branch
      %27 = sbr.rel (0) target = $region13
    $region12: #{fizzbuzz_forward.1} parent=1 // pred_region
      _
    $region13: #{fizzbuzz_forward.1} parent=1 // pred_fallthru
      _
    // Predicated region
    $region14: #{fizzbuzz_forward.1} parent=1 // pred_check
      _
    $region15: #{fizzbuzz_forward.1} parent=1 // pred_check_branch
      %29 = sbr.rel (0) target = $region17
    $region16: #{fizzbuzz_forward.1} parent=1 // pred_region
      %s31 = ssub.s32 2048, 2048
      %32 = vsyncadd [#allocation5], %s31
      %s33 = sshll.u32 [#allocation4], 4
      %s34 = int_to_ptr.vmem [resolvable:$true] %s33
      %39 = dma.hbm_to_vmem [thread:$0]  %s3, 2048, %s34, [#allocation5], 128, 128, 8
    $region17: #{fizzbuzz_forward.1} parent=1 // pred_fallthru
      _
    // Predicated region
    $region18: #{fizzbuzz_forward.1} parent=1 // pred_check
      _
    $region19: #{fizzbuzz_forward.1} parent=1 // pred_check_branch
      %41 = sbr.rel (0) target = $region21
    $region20: #{fizzbuzz_forward.1} parent=1 // pred_region
      _
    $region21: #{fizzbuzz_forward.1} parent=1 // pred_fallthru
      _
    // Predicated region
    $region22: #{fizzbuzz_forward.1} parent=1 // pred_check
      _
    $region23: #{fizzbuzz_forward.1} parent=1 // pred_check_branch
      %43 = sbr.rel (0) target = $region25
    $region24: #{fizzbuzz_forward.1} parent=1 // pred_region
      %44 = dma.done [#allocation3], 2048
    $region25: #{fizzbuzz_forward.1} parent=1 // pred_fallthru
      _
    // Predicated region
    $region26: #{fizzbuzz_forward.1} parent=1 // pred_check
      _
    $region27: #{fizzbuzz_forward.1} parent=1 // pred_check_branch
      %46 = sbr.rel (0) target = $region29
    $region28: #{fizzbuzz_forward.1} parent=1 // pred_region
      %47 = dma.done [#allocation5], 2048
    $region29: #{fizzbuzz_forward.1} parent=1 // pred_fallthru
      _
    %v48 = vld [vmem:[%s0] sm:$0xff]
    %v49 = vld [vmem:[#allocation2] sm:$0xff]
    %v50 = vld [vmem:[#allocation2 + $0x8] sm:$0xff]
    %v51 = vld [vmem:[#allocation2 + $0x10] sm:$0xff]
    %v52 = vld [vmem:[#allocation2 + $0x18] sm:$0xff]
    %v53 = vld [vmem:[#allocation2 + $0x20] sm:$0xff]
    %v54 = vld [vmem:[#allocation2 + $0x28] sm:$0xff]
    %v55 = vld [vmem:[#allocation2 + $0x30] sm:$0xff]
    %v56 = vld [vmem:[#allocation2 + $0x38] sm:$0xff]
    %v57 = vld [vmem:[#allocation2 + $0x40] sm:$0xff]
    %v58 = vld [vmem:[#allocation2 + $0x48] sm:$0xff]
    %v59 = vld [vmem:[#allocation2 + $0x50] sm:$0xff]
    %v60 = vld [vmem:[#allocation2 + $0x58] sm:$0xff]
    %v61 = vld [vmem:[#allocation2 + $0x60] sm:$0xff]
    %v62 = vld [vmem:[#allocation2 + $0x68] sm:$0xff]
    %v63 = vld [vmem:[#allocation2 + $0x70] sm:$0xff]
    %v64 = vld [vmem:[#allocation2 + $0x78] sm:$0xff]
    %v65 = vld [vmem:[%s2] sm:$0x1]
    %v67 = vlaneseq
    %v68 = vshrl.u32 %v67, 7
    %v69 = vsub.s32 0, %v68
    %v70 = vrot.slane %v65, %v69
    %72 = vmatprep.subr.mxu0 0.0
    %73 = vmatpush1.msra.mxu0 %v49
    %74 = vmatprep.subr.mxu0 0.0
    %75 = vmatpush1.msra.mxu0 %v50
    %76 = vmatprep.subr.mxu0 0.0
    %77 = vmatpush1.msra.mxu0 %v51
    %78 = vmatprep.subr.mxu0 0.0
    %79 = vmatpush1.msra.mxu0 %v52
    %80 = vmatprep.subr.mxu0 0.0
    %81 = vmatpush1.msra.mxu0 %v53
    %82 = vmatprep.subr.mxu0 0.0
    %83 = vmatpush1.msra.mxu0 %v54
    %84 = vmatprep.subr.mxu0 0.0
    %85 = vmatpush1.msra.mxu0 %v55
    %86 = vmatprep.subr.mxu0 0.0
    %87 = vmatpush1.msra.mxu0 %v56
    %88 = vmatprep.subr.mxu0 0.0
    %89 = vmatpush1.msra.mxu0 %v57
    %90 = vmatprep.subr.mxu0 0.0
    %91 = vmatpush1.msra.mxu0 %v58
    %92 = vmatprep.subr.mxu0 0.0
    %93 = vmatpush1.msra.mxu0 %v59
    %94 = vmatprep.subr.mxu0 0.0
    %95 = vmatpush1.msra.mxu0 %v60
    %96 = vmatprep.subr.mxu0 0.0
    %97 = vmatpush1.msra.mxu0 %v61
    %98 = vmatprep.subr.mxu0 0.0
    %99 = vmatpush1.msra.mxu0 %v62
    %100 = vmatprep.subr.mxu0 0.0
    %101 = vmatpush1.msra.mxu0 %v63
    %102 = vmatprep.subr.mxu0 0.0
    %103 = vmatpush1.msra.mxu0 %v64
    %104 = vmatprep.subr.mxu0 0.0
    %105 = vmatpush1.msra.mxu0 0.0
    %106 = vmatprep.subr.mxu0 0.0
    %107 = vmatpush1.msra.mxu0 0.0
    %108 = vmatprep.subr.mxu0 0.0
    %109 = vmatpush1.msra.mxu0 0.0
    %110 = vmatprep.subr.mxu0 0.0
    %111 = vmatpush1.msra.mxu0 0.0
    %112 = vmatprep.subr.mxu0 0.0
    %113 = vmatpush1.msra.mxu0 0.0
    %114 = vmatprep.subr.mxu0 0.0
    %115 = vmatpush1.msra.mxu0 0.0
    %116 = vmatprep.subr.mxu0 0.0
    %117 = vmatpush1.msra.mxu0 0.0
    %118 = vmatprep.subr.mxu0 0.0
    %119 = vmatpush1.msra.mxu0 0.0
    %120 = vmatprep.subr.mxu0 0.0
    %121 = vmatpush1.msra.mxu0 0.0
    %122 = vmatprep.subr.mxu0 0.0
    %123 = vmatpush1.msra.mxu0 0.0
    %124 = vmatprep.subr.mxu0 0.0
    %125 = vmatpush1.msra.mxu0 0.0
    %126 = vmatprep.subr.mxu0 0.0
    %127 = vmatpush1.msra.mxu0 0.0
    %128 = vmatprep.subr.mxu0 0.0
    %129 = vmatpush1.msra.mxu0 0.0
    %130 = vmatprep.subr.mxu0 0.0
    %131 = vmatpush1.msra.mxu0 0.0
    %132 = vmatprep.subr.mxu0 0.0
    %133 = vmatpush1.msra.mxu0 0.0
    %134 = vmatprep.subr.mxu0 0.0
    %135 = vmatpush1.msra.mxu0 0.0
    %136 = vmatprep.mubr.f32.mxu0 0.0
    %137 = vmatmul.mubr.f32.gmra.mrb[0].mxu0 %v48
    %v138 = vpop.f32.mrb[0].mxu0
    %v139 = vadd.f32 %v70, %v138
    %v140 = vpop.f32.mrb[0].mxu0
    %141 = vdwg.mxu0
    %v142 = vmax.f32 %v139, 0.0
    %v143 = vld [vmem:[#allocation4] sm:$0xff]
    %v144 = vld [vmem:[#allocation4 + $0x8] sm:$0xff]
    %v145 = vld [vmem:[#allocation4 + $0x10] sm:$0xff]
    %v146 = vld [vmem:[#allocation4 + $0x18] sm:$0xff]
    %v147 = vld [vmem:[#allocation4 + $0x20] sm:$0xff]
    %v148 = vld [vmem:[#allocation4 + $0x28] sm:$0xff]
    %v149 = vld [vmem:[#allocation4 + $0x30] sm:$0xff]
    %v150 = vld [vmem:[#allocation4 + $0x38] sm:$0xff]
    %v151 = vld [vmem:[#allocation4 + $0x40] sm:$0xff]
    %v152 = vld [vmem:[#allocation4 + $0x48] sm:$0xff]
    %v153 = vld [vmem:[#allocation4 + $0x50] sm:$0xff]
    %v154 = vld [vmem:[#allocation4 + $0x58] sm:$0xff]
    %v155 = vld [vmem:[#allocation4 + $0x60] sm:$0xff]
    %v156 = vld [vmem:[#allocation4 + $0x68] sm:$0xff]
    %v157 = vld [vmem:[#allocation4 + $0x70] sm:$0xff]
    %v158 = vld [vmem:[#allocation4 + $0x78] sm:$0xff]
    %v159 = vld [vmem:[%s4] sm:$0x1]
    %v161 = vlaneseq
    %v162 = vshrl.u32 %v161, 7
    %v163 = vsub.s32 0, %v162
    %v164 = vrot.slane %v159, %v163
    %166 = vmatprep.subr.mxu0 0.0
    %167 = vmatpush1.msra.mxu0 %v143
    %168 = vmatprep.subr.mxu0 0.0
    %169 = vmatpush1.msra.mxu0 %v144
    %170 = vmatprep.subr.mxu0 0.0
    %171 = vmatpush1.msra.mxu0 %v145
    %172 = vmatprep.subr.mxu0 0.0
    %173 = vmatpush1.msra.mxu0 %v146
    %174 = vmatprep.subr.mxu0 0.0
    %175 = vmatpush1.msra.mxu0 %v147
    %176 = vmatprep.subr.mxu0 0.0
    %177 = vmatpush1.msra.mxu0 %v148
    %178 = vmatprep.subr.mxu0 0.0
    %179 = vmatpush1.msra.mxu0 %v149
    %180 = vmatprep.subr.mxu0 0.0
    %181 = vmatpush1.msra.mxu0 %v150
    %182 = vmatprep.subr.mxu0 0.0
    %183 = vmatpush1.msra.mxu0 %v151
    %184 = vmatprep.subr.mxu0 0.0
    %185 = vmatpush1.msra.mxu0 %v152
    %186 = vmatprep.subr.mxu0 0.0
    %187 = vmatpush1.msra.mxu0 %v153
    %188 = vmatprep.subr.mxu0 0.0
    %189 = vmatpush1.msra.mxu0 %v154
    %190 = vmatprep.subr.mxu0 0.0
    %191 = vmatpush1.msra.mxu0 %v155
    %192 = vmatprep.subr.mxu0 0.0
    %193 = vmatpush1.msra.mxu0 %v156
    %194 = vmatprep.subr.mxu0 0.0
    %195 = vmatpush1.msra.mxu0 %v157
    %196 = vmatprep.subr.mxu0 0.0
    %197 = vmatpush1.msra.mxu0 %v158
    %198 = vmatprep.subr.mxu0 0.0
    %199 = vmatpush1.msra.mxu0 0.0
    %200 = vmatprep.subr.mxu0 0.0
    %201 = vmatpush1.msra.mxu0 0.0
    %202 = vmatprep.subr.mxu0 0.0
    %203 = vmatpush1.msra.mxu0 0.0
    %204 = vmatprep.subr.mxu0 0.0
    %205 = vmatpush1.msra.mxu0 0.0
    %206 = vmatprep.subr.mxu0 0.0
    %207 = vmatpush1.msra.mxu0 0.0
    %208 = vmatprep.subr.mxu0 0.0
    %209 = vmatpush1.msra.mxu0 0.0
    %210 = vmatprep.subr.mxu0 0.0
    %211 = vmatpush1.msra.mxu0 0.0
    %212 = vmatprep.subr.mxu0 0.0
    %213 = vmatpush1.msra.mxu0 0.0
    %214 = vmatprep.subr.mxu0 0.0
    %215 = vmatpush1.msra.mxu0 0.0
    %216 = vmatprep.subr.mxu0 0.0
    %217 = vmatpush1.msra.mxu0 0.0
    %218 = vmatprep.subr.mxu0 0.0
    %219 = vmatpush1.msra.mxu0 0.0
    %220 = vmatprep.subr.mxu0 0.0
    %221 = vmatpush1.msra.mxu0 0.0
    %222 = vmatprep.subr.mxu0 0.0
    %223 = vmatpush1.msra.mxu0 0.0
    %224 = vmatprep.subr.mxu0 0.0
    %225 = vmatpush1.msra.mxu0 0.0
    %226 = vmatprep.subr.mxu0 0.0
    %227 = vmatpush1.msra.mxu0 0.0
    %228 = vmatprep.subr.mxu0 0.0
    %229 = vmatpush1.msra.mxu0 0.0
    %230 = vmatprep.mubr.f32.mxu0 0.0
    %231 = vmatmul.mubr.f32.gmra.mrb[0].mxu0 %v142
    %v232 = vpop.f32.mrb[0].mxu0
    %v233 = vadd.f32 %v164, %v232
    %v234 = vpop.f32.mrb[0].mxu0
    %235 = vdwg.mxu0
    %236 = vst [vmem:[%s5] sm:$0xff] %v233
    // Predicated region
    $region30: #{fizzbuzz_forward.1} parent=1 // pred_check
      _
    $region31: #{fizzbuzz_forward.1} parent=1 // pred_check_branch
      %238 = sbr.rel (0) target = $region33
    $region32: #{fizzbuzz_forward.1} parent=1 // pred_region
      _
    $region33: #{fizzbuzz_forward.1} parent=1 // pred_fallthru
      _
    // Predicated region
    $region34: #{fizzbuzz_forward.1} parent=1 // pred_check
      _
    $region35: #{fizzbuzz_forward.1} parent=1 // pred_check_branch
      %240 = sbr.rel (0) target = $region37
    $region36: #{fizzbuzz_forward.1} parent=1 // pred_region
      _
    $region37: #{fizzbuzz_forward.1} parent=1 // pred_fallthru
      _
    %241 = vsyncpa [#allocation3], 1
    %242 = vsyncpa [#allocation5], 1

</llo_original>
